<compile_context>
chip_gen: v7x
topology: tpu7x:2x2x1
jax: 0.10.0
libtpu: 0.0.40
codegen_flags: <defaults>
</compile_context>

<pallas_src>
import jax
import jax.numpy as jnp
from jax.experimental import pallas as pl
from jax.experimental.pallas import tpu as pltpu

IN_FEATURES = 20
HIDDEN = 256
OUT_FEATURES = 10

IN_PAD = 32        # contraction dim of matmul-1, padded 20 -> 32 (sublane aligned)
BIAS_ROW = IN_FEATURES  # padded input row used to fold b1 into matmul-1
OUT_PAD = 16       # output rows padded 10 -> 16 (sublane aligned, f32)
LANE = 128         # batch (lane) axis granularity
TB_MAX = 8192      # max batch tile; ~1 MiB/buffer -> well under 32 MiB scoped VMEM


def _round_up(x, m):
    return (x + m - 1) // m * m


def mlp_kernel(x_ref, w1t_ref, w2t_ref, b2_ref, o_ref):
    # x_ref:   (IN_PAD, tb)  bf16, row BIAS_ROW is all ones (bias-1 fold)
    # w1t_ref: (HIDDEN, IN_PAD) bf16, column BIAS_ROW holds b1
    # w2t_ref: (OUT_PAD, HIDDEN) bf16
    # b2_ref:  (OUT_PAD, 1) f32
    # o_ref:   (OUT_PAD, tb) f32
    h = jnp.dot(w1t_ref[...], x_ref[...], preferred_element_type=jnp.float32)
    h = jnp.maximum(h, 0.0)                       # ReLU in f32 (safe on v5e VPU)
    y = jnp.dot(w2t_ref[...], h.astype(jnp.bfloat16),
                preferred_element_type=jnp.float32)
    o_ref[...] = (y + b2_ref[...]).astype(o_ref.dtype)   # lane-broadcast bias2


def mlp_forward(x, w1, b1, w2, b2):
    """x: (B, 20) f32; w1: (20, 256); b1: (256,); w2: (256, 10); b2: (10,)."""
    B = x.shape[0]
    b1 = jnp.reshape(b1, (-1,))
    b2 = jnp.reshape(b2, (-1,))

    # Tile the batch (lane) axis: multiples of 128, capped at TB_MAX, and aim
    # for >= 2 grid steps when there is enough work (v7x megacore).
    half = (B + 1) // 2
    tb = min(TB_MAX, _round_up(max(half, 1), LANE))
    b_pad = _round_up(B, tb)

    # ---- one-time layout plumbing (feature-major bf16 slabs) ----
    x_p = jnp.zeros((IN_PAD, b_pad), jnp.bfloat16)
    x_p = x_p.at[:IN_FEATURES, :B].set(x.T.astype(jnp.bfloat16))
    x_p = x_p.at[BIAS_ROW, :].set(jnp.ones((b_pad,), jnp.bfloat16))

    w1t = jnp.zeros((HIDDEN, IN_PAD), jnp.bfloat16)
    w1t = w1t.at[:, :IN_FEATURES].set(w1.T.astype(jnp.bfloat16))
    w1t = w1t.at[:, BIAS_ROW].set(b1.astype(jnp.bfloat16))       # folded bias-1

    w2t = jnp.zeros((OUT_PAD, HIDDEN), jnp.bfloat16)
    w2t = w2t.at[:OUT_FEATURES, :].set(w2.T.astype(jnp.bfloat16))

    b2_p = jnp.zeros((OUT_PAD, 1), jnp.float32)
    b2_p = b2_p.at[:OUT_FEATURES, 0].set(b2.astype(jnp.float32))

    grid = (b_pad // tb,)
    out_t = pl.pallas_call(
        mlp_kernel,
        out_shape=jax.ShapeDtypeStruct((OUT_PAD, b_pad), jnp.float32),
        grid=grid,
        in_specs=[
            pl.BlockSpec((IN_PAD, tb), lambda i: (0, i)),      # streamed x tile
            pl.BlockSpec((HIDDEN, IN_PAD), lambda i: (0, 0)),  # VMEM-resident weights
            pl.BlockSpec((OUT_PAD, HIDDEN), lambda i: (0, 0)),
            pl.BlockSpec((OUT_PAD, 1), lambda i: (0, 0)),
        ],
        out_specs=pl.BlockSpec((OUT_PAD, tb), lambda i: (0, i)),  # lane-dense out
        compiler_params=pltpu.CompilerParams(
            dimension_semantics=("parallel",)),                   # megacore on v7x
    )(x_p, w1t, w2t, b2_p)

    # Back to the logical (B, 10) layout (tiny: 10 rows).
    return out_t[:OUT_FEATURES, :B].T


def init_params(key):
    # Deterministic init mimicking nn.Linear's U(-1/sqrt(fan_in), 1/sqrt(fan_in)).
    k1, k2, k3, k4 = jax.random.split(key, 4)
    bound1 = 1.0 / jnp.sqrt(IN_FEATURES)
    bound2 = 1.0 / jnp.sqrt(HIDDEN)
    w1 = jax.random.uniform(k1, (IN_FEATURES, HIDDEN), jnp.float32, -bound1, bound1)
    b1 = jax.random.uniform(k2, (HIDDEN,), jnp.float32, -bound1, bound1)
    w2 = jax.random.uniform(k3, (HIDDEN, OUT_FEATURES), jnp.float32, -bound2, bound2)
    b2 = jax.random.uniform(k4, (OUT_FEATURES,), jnp.float32, -bound2, bound2)
    return w1, b1, w2, b2


def reference(x, w1, b1, w2, b2):
    # Pure-JAX reference mirroring the kernel's bf16 cast points exactly
    # (x, w1, b1, w2 and the hidden activations round through bf16).
    f = lambda a: a.astype(jnp.bfloat16).astype(jnp.float32)
    h = jnp.maximum(f(x) @ f(w1) + f(b1)[None, :], 0.0)
    return f(h) @ f(w2) + jnp.reshape(b2, (1, -1)).astype(jnp.float32)


if __name__ == "__main__":
    key = jax.random.PRNGKey(0)
    kx, kp = jax.random.split(key)
    batch = 2
    x = jax.random.normal(kx, (batch, IN_FEATURES), jnp.float32)
    w1, b1, w2, b2 = init_params(kp)

    out = mlp_forward(x, w1, b1, w2, b2)
    out = jax.block_until_ready(out)

    ref = reference(x, w1, b1, w2, b2)
    assert out.shape == (batch, OUT_FEATURES)
    assert jnp.allclose(out, ref, atol=1e-3, rtol=1e-3)

    print("KERNEL_OK")
</pallas_src>

<mosaic_0001>
module attributes {stable_mosaic.version = 11 : i64} {
  func.func @mlp_kernel(%arg0: i32, %arg1: memref<32x128xbf16, #tpu.memory_space<vmem>>, %arg2: memref<256x32xbf16, #tpu.memory_space<vmem>>, %arg3: memref<16x256xbf16, #tpu.memory_space<vmem>>, %arg4: memref<16x1xf32, #tpu.memory_space<vmem>>, %arg5: memref<16x128xf32, #tpu.memory_space<vmem>>) attributes {dimension_semantics = [#tpu.dimension_semantics<parallel>], iteration_bounds = array<i64: 1>, scalar_prefetch = 0 : i64, scratch_operands = 0 : i64, tpu.core_type = #tpu.core_type<tc>, window_params = [{transform_indices = @transform_0, window_bounds = array<i64: 32, 128>}, {pipeline_mode = #tpu.pipeline_mode<synchronous>, transform_indices = @transform_1, window_bounds = array<i64: 256, 32>}, {pipeline_mode = #tpu.pipeline_mode<synchronous>, transform_indices = @transform_2, window_bounds = array<i64: 16, 256>}, {pipeline_mode = #tpu.pipeline_mode<synchronous>, transform_indices = @transform_3, window_bounds = array<i64: 16, 1>}, {transform_indices = @transform_4, window_bounds = array<i64: 16, 128>}]} {
    %c0 = arith.constant 0 : index
    %c0_0 = arith.constant 0 : index
    %0 = vector.load %arg2[%c0, %c0_0] : memref<256x32xbf16, #tpu.memory_space<vmem>>, vector<256x32xbf16>
    %c0_1 = arith.constant 0 : index
    %c0_2 = arith.constant 0 : index
    %1 = vector.load %arg1[%c0_1, %c0_2] : memref<32x128xbf16, #tpu.memory_space<vmem>>, vector<32x128xbf16>
    %cst = arith.constant dense<0.000000e+00> : vector<256x128xf32>
    %2 = tpu.matmul %0, %1, %cst {dimension_numbers = #tpu.dot_dimension_numbers<[1], [0], [0], [1], [0, 0, 1, 1], [], []>} : vector<256x32xbf16>, vector<32x128xbf16>, vector<256x128xf32> -> vector<256x128xf32>
    %cst_3 = arith.constant 0.000000e+00 : f32
    %3 = vector.broadcast %cst_3 : f32 to vector<256x128xf32>
    %4 = arith.maximumf %2, %3 : vector<256x128xf32>
    %c0_4 = arith.constant 0 : index
    %c0_5 = arith.constant 0 : index
    %5 = vector.load %arg3[%c0_4, %c0_5] : memref<16x256xbf16, #tpu.memory_space<vmem>>, vector<16x256xbf16>
    %6 = arith.truncf %4 : vector<256x128xf32> to vector<256x128xbf16>
    %cst_6 = arith.constant dense<0.000000e+00> : vector<16x128xf32>
    %7 = tpu.matmul %5, %6, %cst_6 {dimension_numbers = #tpu.dot_dimension_numbers<[1], [0], [0], [1], [0, 0, 1, 1], [], []>} : vector<16x256xbf16>, vector<256x128xbf16>, vector<16x128xf32> -> vector<16x128xf32>
    %c0_7 = arith.constant 0 : index
    %c0_8 = arith.constant 0 : index
    %8 = vector.load %arg4[%c0_7, %c0_8] : memref<16x1xf32, #tpu.memory_space<vmem>>, vector<16x1xf32>
    %9 = vector.broadcast %8 : vector<16x1xf32> to vector<16x128xf32>
    %10 = arith.addf %7, %9 : vector<16x128xf32>
    %c0_9 = arith.constant 0 : index
    %c0_10 = arith.constant 0 : index
    %11 = vector.load %arg5[%c0_9, %c0_10] : memref<16x128xf32, #tpu.memory_space<vmem>>, vector<16x128xf32>
    tpu.vector_store %arg5[%c0_9, %c0_10], %10 {strides = array<i32>} : memref<16x128xf32, #tpu.memory_space<vmem>>, vector<16x128xf32>,
    return
  }
  func.func @transform_0(%arg0: i32) -> (i32, i32) {
    %c0_i32 = arith.constant 0 : i32
    %c0_i32_0 = arith.constant 0 : i32
    return %c0_i32, %arg0 : i32, i32
  }
  func.func @transform_1(%arg0: i32) -> (i32, i32) {
    %c0_i32 = arith.constant 0 : i32
    %c0_i32_0 = arith.constant 0 : i32
    %c0_i32_1 = arith.constant 0 : i32
    return %c0_i32, %c0_i32_0 : i32, i32
  }
  func.func @transform_2(%arg0: i32) -> (i32, i32) {
    %c0_i32 = arith.constant 0 : i32
    %c0_i32_0 = arith.constant 0 : i32
    %c0_i32_1 = arith.constant 0 : i32
    return %c0_i32, %c0_i32_0 : i32, i32
  }
  func.func @transform_3(%arg0: i32) -> (i32, i32) {
    %c0_i32 = arith.constant 0 : i32
    %c0_i32_0 = arith.constant 0 : i32
    %c0_i32_1 = arith.constant 0 : i32
    return %c0_i32, %c0_i32_0 : i32, i32
  }
  func.func @transform_4(%arg0: i32) -> (i32, i32) {
    %c0_i32 = arith.constant 0 : i32
    %c0_i32_0 = arith.constant 0 : i32
    return %c0_i32, %arg0 : i32, i32
  }
}

</mosaic_0001>

<llo_original>
// kernel: tpu_custom_call.1
$region0: #{tpu_custom_call.1}
  #allocation0 [shape = 'u32[]', space=smem, size = 0x4, offset = 0x4, fixed_abs, tag = 'smem constant byte address 0x4 - core index']
  #allocation1 [shape = 'u32[144,128]{1,0:T(1,128)}', space=vmem, size = 0x12000, scoped, tag = 'internal scratch']
  %s0 = inlined_call_operand.vmem [shape: bf16[32,128], index: 0, kind: input, shape index: {}]
  %s1 = inlined_call_operand.vmem [shape: bf16[256,32], index: 1, kind: input, shape index: {}]
  %s2 = inlined_call_operand.vmem [shape: bf16[16,256], index: 2, kind: input, shape index: {}]
  %s3 = inlined_call_operand.vmem [shape: f32[16,1], index: 3, kind: input, shape index: {}]
  %s4 = inlined_call_operand.hbm [shape: f32[16,128], index: 4, kind: output, shape index: {}]
  %s5 = sld [smem:[#allocation0]]
  $region26: #{tpu_custom_call.1} parent=0
    _
  %s7 = ssub.s32 1, %s5
  %s8 = scalar_select 0, %s7, %s5
  $region1: #{tpu_custom_call.1} parent=0
    #allocation2 [shape = 'u8[8192]{0}', space=vmem, size = 0x2000, scoped, tag = 'output window, operand 0, single buffered']
    #allocation3 [shape = 's32[1]{0}', space=sflag, size = 0x4, scoped, tag = 'scoped memory for tpu_custom_call.1']
    %9 = vsyncpa [#allocation3], 0
    // Predicated region
    $region2: #{tpu_custom_call.1} parent=1 // pred_check
      _
    $region3: #{tpu_custom_call.1} parent=1 // pred_check_branch
      %11 = sbr.rel (0) target = $region5
    $region4: #{tpu_custom_call.1} parent=1 // pred_region
      _
    $region5: #{tpu_custom_call.1} parent=1 // pred_fallthru
      _
    // Predicated region
    $region6: #{tpu_custom_call.1} parent=1 // pred_check
      _
    $region7: #{tpu_custom_call.1} parent=1 // pred_check_branch
      %13 = sbr.rel (0) target = $region9
    $region8: #{tpu_custom_call.1} parent=1 // pred_region
      _
    $region9: #{tpu_custom_call.1} parent=1 // pred_fallthru
      _
    // Predicated region
    $region10: #{tpu_custom_call.1} parent=1 // pred_check
      _
    $region11: #{tpu_custom_call.1} parent=1 // pred_check_branch
      %15 = sbr.rel (0) target = $region13
    $region12: #{tpu_custom_call.1} parent=1 // pred_region
      _
    $region13: #{tpu_custom_call.1} parent=1 // pred_fallthru
      _
    // Predicated region
    $region14: #{tpu_custom_call.1} parent=1 // pred_check
      _
    $region15: #{tpu_custom_call.1} parent=1 // pred_check_branch
      %17 = sbr.rel (0) target = $region17
    $region16: #{tpu_custom_call.1} parent=1 // pred_region
      _
    $region17: #{tpu_custom_call.1} parent=1 // pred_fallthru
      _
    %v19 = vld [vmem:[%s1] sm:$0xf]
    %v20 = vld [vmem:[%s1 + $0x4] sm:$0xf]
    %v21 = vld [vmem:[%s1 + $0x8] sm:$0xf]
    %v22 = vld [vmem:[%s1 + $0xc] sm:$0xf]
    %v23 = vld [vmem:[%s1 + $0x10] sm:$0xf]
    %v24 = vld [vmem:[%s1 + $0x14] sm:$0xf]
    %v25 = vld [vmem:[%s1 + $0x18] sm:$0xf]
    %v26 = vld [vmem:[%s1 + $0x1c] sm:$0xf]
    %v27 = vld [vmem:[%s1 + $0x20] sm:$0xf]
    %v28 = vld [vmem:[%s1 + $0x24] sm:$0xf]
    %v29 = vld [vmem:[%s1 + $0x28] sm:$0xf]
    %v30 = vld [vmem:[%s1 + $0x2c] sm:$0xf]
    %v31 = vld [vmem:[%s1 + $0x30] sm:$0xf]
    %v32 = vld [vmem:[%s1 + $0x34] sm:$0xf]
    %v33 = vld [vmem:[%s1 + $0x38] sm:$0xf]
    %v34 = vld [vmem:[%s1 + $0x3c] sm:$0xf]
    %v35 = vld [vmem:[%s1 + $0x40] sm:$0xf]
    %v36 = vld [vmem:[%s1 + $0x44] sm:$0xf]
    %v37 = vld [vmem:[%s1 + $0x48] sm:$0xf]
    %v38 = vld [vmem:[%s1 + $0x4c] sm:$0xf]
    %v39 = vld [vmem:[%s1 + $0x50] sm:$0xf]
    %v40 = vld [vmem:[%s1 + $0x54] sm:$0xf]
    %v41 = vld [vmem:[%s1 + $0x58] sm:$0xf]
    %v42 = vld [vmem:[%s1 + $0x5c] sm:$0xf]
    %v43 = vld [vmem:[%s1 + $0x60] sm:$0xf]
    %v44 = vld [vmem:[%s1 + $0x64] sm:$0xf]
    %v45 = vld [vmem:[%s1 + $0x68] sm:$0xf]
    %v46 = vld [vmem:[%s1 + $0x6c] sm:$0xf]
    %v47 = vld [vmem:[%s1 + $0x70] sm:$0xf]
    %v48 = vld [vmem:[%s1 + $0x74] sm:$0xf]
    %v49 = vld [vmem:[%s1 + $0x78] sm:$0xf]
    %v50 = vld [vmem:[%s1 + $0x7c] sm:$0xf]
    %v51 = vld [vmem:[%s0] sm:$0xf]
    %v52 = vld [vmem:[%s0 + $0x4] sm:$0xf]
    %v53 = vld [vmem:[%s0 + $0x8] sm:$0xf]
    %v54 = vld [vmem:[%s0 + $0xc] sm:$0xf]
    %v87 = vunpack.c.l.b16 %v19
    %v88 = vunpack.c.l.b16 %v20
    %v89 = vunpack.c.l.b16 %v21
    %v90 = vunpack.c.l.b16 %v22
    %v91 = vunpack.c.l.b16 %v23
    %v92 = vunpack.c.l.b16 %v24
    %v93 = vunpack.c.l.b16 %v25
    %v94 = vunpack.c.l.b16 %v26
    %v95 = vunpack.c.l.b16 %v27
    %v96 = vunpack.c.l.b16 %v28
    %v97 = vunpack.c.l.b16 %v29
    %v98 = vunpack.c.l.b16 %v30
    %v99 = vunpack.c.l.b16 %v31
    %v100 = vunpack.c.l.b16 %v32
    %v101 = vunpack.c.l.b16 %v33
    %v102 = vunpack.c.l.b16 %v34
    %v103 = vunpack.c.l.b16 %v35
    %v104 = vunpack.c.l.b16 %v36
    %v105 = vunpack.c.l.b16 %v37
    %v106 = vunpack.c.l.b16 %v38
    %v107 = vunpack.c.l.b16 %v39
    %v108 = vunpack.c.l.b16 %v40
    %v109 = vunpack.c.l.b16 %v41
    %v110 = vunpack.c.l.b16 %v42
    %v111 = vunpack.c.l.b16 %v43
    %v112 = vunpack.c.l.b16 %v44
    %v113 = vunpack.c.l.b16 %v45
    %v114 = vunpack.c.l.b16 %v46
    %v115 = vunpack.c.l.b16 %v47
    %v116 = vunpack.c.l.b16 %v48
    %v117 = vunpack.c.l.b16 %v49
    %v118 = vunpack.c.l.b16 %v50
    %v119 = vpack.c.b16 %v88, %v87
    %v120 = vpack.c.b16 %v90, %v89
    %v121 = vpack.c.b16 %v92, %v91
    %v122 = vpack.c.b16 %v94, %v93
    %v123 = vpack.c.b16 %v96, %v95
    %v124 = vpack.c.b16 %v98, %v97
    %v125 = vpack.c.b16 %v100, %v99
    %v126 = vpack.c.b16 %v102, %v101
    %v127 = vpack.c.b16 %v104, %v103
    %v128 = vpack.c.b16 %v106, %v105
    %v129 = vpack.c.b16 %v108, %v107
    %v130 = vpack.c.b16 %v110, %v109
    %v131 = vpack.c.b16 %v112, %v111
    %v132 = vpack.c.b16 %v114, %v113
    %v133 = vpack.c.b16 %v116, %v115
    %v134 = vpack.c.b16 %v118, %v117
    %v139 = vunpack.c.l.b16 %v51
    %v140 = vunpack.c.l.b16 %v52
    %v141 = vunpack.c.l.b16 %v53
    %v142 = vunpack.c.l.b16 %v54
    %v143 = vpack.c.b16 %v140, %v139
    %v144 = vpack.c.b16 %v142, %v141
    %vm147 = vcmask 261120
    %v149 = vsel %vm147, %v119, 0
    %v152 = vsel %vm147, %v120, 0
    %v155 = vsel %vm147, %v121, 0
    %v158 = vsel %vm147, %v122, 0
    %v161 = vsel %vm147, %v123, 0
    %v164 = vsel %vm147, %v124, 0
    %v167 = vsel %vm147, %v125, 0
    %v170 = vsel %vm147, %v126, 0
    %v173 = vsel %vm147, %v127, 0
    %v176 = vsel %vm147, %v128, 0
    %v179 = vsel %vm147, %v129, 0
    %v182 = vsel %vm147, %v130, 0
    %v185 = vsel %vm147, %v131, 0
    %v188 = vsel %vm147, %v132, 0
    %v191 = vsel %vm147, %v133, 0
    %v194 = vsel %vm147, %v134, 0
    %196 = vmatprep.subr.bf16.mxu0 0
    %197 = vmatpush1.bf16.msra.mxu0 %v143
    %198 = vmatprep.subr.bf16.mxu0 0
    %199 = vmatpush1.bf16.msra.mxu0 %v144
    %200 = vmatprep.subr.bf16.mxu0 0
    %201 = vmatpush1.bf16.msra.mxu0 0
    %202 = vmatprep.subr.bf16.mxu0 0
    %203 = vmatpush1.bf16.msra.mxu0 0
    %204 = vmatprep.subr.bf16.mxu0 0
    %205 = vmatpush1.bf16.msra.mxu0 0
    %206 = vmatprep.subr.bf16.mxu0 0
    %207 = vmatpush1.bf16.msra.mxu0 0
    %208 = vmatprep.subr.bf16.mxu0 0
    %209 = vmatpush1.bf16.msra.mxu0 0
    %210 = vmatprep.subr.bf16.mxu0 0
    %211 = vmatpush1.bf16.msra.mxu0 0
    %212 = vmatprep.subr.bf16.mxu0 0
    %213 = vmatpush1.bf16.msra.mxu0 0
    %214 = vmatprep.subr.bf16.mxu0 0
    %215 = vmatpush1.bf16.msra.mxu0 0
    %216 = vmatprep.subr.bf16.mxu0 0
    %217 = vmatpush1.bf16.msra.mxu0 0
    %218 = vmatprep.subr.bf16.mxu0 0
    %219 = vmatpush1.bf16.msra.mxu0 0
    %220 = vmatprep.subr.bf16.mxu0 0
    %221 = vmatpush1.bf16.msra.mxu0 0
    %222 = vmatprep.subr.bf16.mxu0 0
    %223 = vmatpush1.bf16.msra.mxu0 0
    %224 = vmatprep.subr.bf16.mxu0 0
    %225 = vmatpush1.bf16.msra.mxu0 0
    %226 = vmatprep.subr.bf16.mxu0 0
    %227 = vmatpush1.bf16.msra.mxu0 0
    %228 = vmatprep.mubr.bf16.mxu0 0
    %229 = vmatmul.mubr.bf16.gmra.mrb[0].mxu0 %v149
    %v230 = vpop.f32.mrb[0].mxu0
    %v231 = vadd.f32 0.0, %v230
    %v232 = vpop.f32.mrb[0].mxu0
    %v233 = vpop.f32.mrb[0].mxu0
    %v234 = vadd.f32 0.0, %v233
    %v235 = vpop.f32.mrb[0].mxu0
    %236 = vmatprep.mubr.bf16.mxu0 0
    %237 = vmatmul.mubr.bf16.gmra.mrb[0].mxu0 %v152
    %v238 = vpop.f32.mrb[0].mxu0
    %v239 = vadd.f32 0.0, %v238
    %v240 = vpop.f32.mrb[0].mxu0
    %v241 = vpop.f32.mrb[0].mxu0
    %v242 = vadd.f32 0.0, %v241
    %v243 = vpop.f32.mrb[0].mxu0
    %244 = vmatprep.mubr.bf16.mxu0 0
    %245 = vmatmul.mubr.bf16.gmra.mrb[0].mxu0 %v155
    %v246 = vpop.f32.mrb[0].mxu0
    %v247 = vadd.f32 0.0, %v246
    %v248 = vpop.f32.mrb[0].mxu0
    %v249 = vpop.f32.mrb[0].mxu0
    %v250 = vadd.f32 0.0, %v249
    %v251 = vpop.f32.mrb[0].mxu0
    %252 = vmatprep.mubr.bf16.mxu0 0
    %253 = vmatmul.mubr.bf16.gmra.mrb[0].mxu0 %v158
    %v254 = vpop.f32.mrb[0].mxu0
    %v255 = vadd.f32 0.0, %v254
    %v256 = vpop.f32.mrb[0].mxu0
    %v257 = vpop.f32.mrb[0].mxu0
    %v258 = vadd.f32 0.0, %v257
    %v259 = vpop.f32.mrb[0].mxu0
    %260 = vmatprep.mubr.bf16.mxu0 0
    %261 = vmatmul.mubr.bf16.gmra.mrb[0].mxu0 %v161
    %v262 = vpop.f32.mrb[0].mxu0
    %v263 = vadd.f32 0.0, %v262
    %v264 = vpop.f32.mrb[0].mxu0
    %v265 = vpop.f32.mrb[0].mxu0
    %v266 = vadd.f32 0.0, %v265
    %v267 = vpop.f32.mrb[0].mxu0
    %268 = vmatprep.mubr.bf16.mxu0 0
    %269 = vmatmul.mubr.bf16.gmra.mrb[0].mxu0 %v164
    %v270 = vpop.f32.mrb[0].mxu0
    %v271 = vadd.f32 0.0, %v270
    %v272 = vpop.f32.mrb[0].mxu0
    %v273 = vpop.f32.mrb[0].mxu0
    %v274 = vadd.f32 0.0, %v273
    %v275 = vpop.f32.mrb[0].mxu0
    %276 = vmatprep.mubr.bf16.mxu0 0
    %277 = vmatmul.mubr.bf16.gmra.mrb[0].mxu0 %v167
    %v278 = vpop.f32.mrb[0].mxu0
    %v279 = vadd.f32 0.0, %v278
    %v280 = vpop.f32.mrb[0].mxu0
    %v281 = vpop.f32.mrb[0].mxu0
    %v282 = vadd.f32 0.0, %v281
    %v283 = vpop.f32.mrb[0].mxu0
    %284 = vmatprep.mubr.bf16.mxu0 0
    %285 = vmatmul.mubr.bf16.gmra.mrb[0].mxu0 %v170
    %v286 = vpop.f32.mrb[0].mxu0
    %v287 = vadd.f32 0.0, %v286
    %v288 = vpop.f32.mrb[0].mxu0
    %v289 = vpop.f32.mrb[0].mxu0
    %v290 = vadd.f32 0.0, %v289
    %v291 = vpop.f32.mrb[0].mxu0
    %292 = vmatprep.mubr.bf16.mxu0 0
    %293 = vmatmul.mubr.bf16.gmra.mrb[0].mxu0 %v173
    %v294 = vpop.f32.mrb[0].mxu0
    %v295 = vadd.f32 0.0, %v294
    %v296 = vpop.f32.mrb[0].mxu0
    %v297 = vpop.f32.mrb[0].mxu0
    %v298 = vadd.f32 0.0, %v297
    %v299 = vpop.f32.mrb[0].mxu0
    %300 = vmatprep.mubr.bf16.mxu0 0
    %301 = vmatmul.mubr.bf16.gmra.mrb[0].mxu0 %v176
    %v302 = vpop.f32.mrb[0].mxu0
    %v303 = vadd.f32 0.0, %v302
    %v304 = vpop.f32.mrb[0].mxu0
    %v305 = vpop.f32.mrb[0].mxu0
    %v306 = vadd.f32 0.0, %v305
    %v307 = vpop.f32.mrb[0].mxu0
    %308 = vmatprep.mubr.bf16.mxu0 0
    %309 = vmatmul.mubr.bf16.gmra.mrb[0].mxu0 %v179
    %v310 = vpop.f32.mrb[0].mxu0
    %v311 = vadd.f32 0.0, %v310
    %v312 = vpop.f32.mrb[0].mxu0
    %v313 = vpop.f32.mrb[0].mxu0
    %v314 = vadd.f32 0.0, %v313
    %v315 = vpop.f32.mrb[0].mxu0
    %316 = vmatprep.mubr.bf16.mxu0 0
    %317 = vmatmul.mubr.bf16.gmra.mrb[0].mxu0 %v182
    %v318 = vpop.f32.mrb[0].mxu0
    %v319 = vadd.f32 0.0, %v318
    %v320 = vpop.f32.mrb[0].mxu0
    %v321 = vpop.f32.mrb[0].mxu0
    %v322 = vadd.f32 0.0, %v321
    %v323 = vpop.f32.mrb[0].mxu0
    %324 = vmatprep.mubr.bf16.mxu0 0
    %325 = vmatmul.mubr.bf16.gmra.mrb[0].mxu0 %v185
    %v326 = vpop.f32.mrb[0].mxu0
    %v327 = vadd.f32 0.0, %v326
    %v328 = vpop.f32.mrb[0].mxu0
    %v329 = vpop.f32.mrb[0].mxu0
    %v330 = vadd.f32 0.0, %v329
    %v331 = vpop.f32.mrb[0].mxu0
    %332 = vmatprep.mubr.bf16.mxu0 0
    %333 = vmatmul.mubr.bf16.gmra.mrb[0].mxu0 %v188
    %v334 = vpop.f32.mrb[0].mxu0
    %v335 = vadd.f32 0.0, %v334
    %v336 = vpop.f32.mrb[0].mxu0
    %v337 = vpop.f32.mrb[0].mxu0
    %v338 = vadd.f32 0.0, %v337
    %v339 = vpop.f32.mrb[0].mxu0
    %340 = vmatprep.mubr.bf16.mxu0 0
    %341 = vmatmul.mubr.bf16.gmra.mrb[0].mxu0 %v191
    %v342 = vpop.f32.mrb[0].mxu0
    %v343 = vadd.f32 0.0, %v342
    %v344 = vpop.f32.mrb[0].mxu0
    %v345 = vpop.f32.mrb[0].mxu0
    %v346 = vadd.f32 0.0, %v345
    %v347 = vpop.f32.mrb[0].mxu0
    %348 = vmatprep.mubr.bf16.mxu0 0
    %349 = vmatmul.mubr.bf16.gmra.mrb[0].mxu0 %v194
    %v350 = vpop.f32.mrb[0].mxu0
    %v351 = vadd.f32 0.0, %v350
    %v352 = vpop.f32.mrb[0].mxu0
    %v353 = vpop.f32.mrb[0].mxu0
    %v354 = vadd.f32 0.0, %v353
    %v355 = vpop.f32.mrb[0].mxu0
    %356 = vdwg.mxu0
    %v357 = vmax.f32 %v231, 0.0
    %v358 = vmax.f32 %v234, 0.0
    %v359 = vmax.f32 %v239, 0.0
    %v360 = vmax.f32 %v242, 0.0
    %v361 = vmax.f32 %v247, 0.0
    %v362 = vmax.f32 %v250, 0.0
    %v363 = vmax.f32 %v255, 0.0
    %v364 = vmax.f32 %v258, 0.0
    %v365 = vmax.f32 %v263, 0.0
    %v366 = vmax.f32 %v266, 0.0
    %v367 = vmax.f32 %v271, 0.0
    %v368 = vmax.f32 %v274, 0.0
    %v369 = vmax.f32 %v279, 0.0
    %v370 = vmax.f32 %v282, 0.0
    %v371 = vmax.f32 %v287, 0.0
    %v372 = vmax.f32 %v290, 0.0
    %v373 = vmax.f32 %v295, 0.0
    %v374 = vmax.f32 %v298, 0.0
    %v375 = vmax.f32 %v303, 0.0
    %v376 = vmax.f32 %v306, 0.0
    %v377 = vmax.f32 %v311, 0.0
    %v378 = vmax.f32 %v314, 0.0
    %v379 = vmax.f32 %v319, 0.0
    %v380 = vmax.f32 %v322, 0.0
    %v381 = vmax.f32 %v327, 0.0
    %v382 = vmax.f32 %v330, 0.0
    %v383 = vmax.f32 %v335, 0.0
    %v384 = vmax.f32 %v338, 0.0
    %v385 = vmax.f32 %v343, 0.0
    %v386 = vmax.f32 %v346, 0.0
    %v387 = vmax.f32 %v351, 0.0
    %v388 = vmax.f32 %v354, 0.0
    %v389 = vld [vmem:[%s2] sm:$0xff]
    %v390 = vld [vmem:[%s2 + $0x8] sm:$0xff]
    %v391 = vpack.c.bf16 %v358, %v357
    %v392 = vpack.c.bf16 %v360, %v359
    %v393 = vpack.c.bf16 %v362, %v361
    %v394 = vpack.c.bf16 %v364, %v363
    %v395 = vpack.c.bf16 %v366, %v365
    %v396 = vpack.c.bf16 %v368, %v367
    %v397 = vpack.c.bf16 %v370, %v369
    %v398 = vpack.c.bf16 %v372, %v371
    %v399 = vpack.c.bf16 %v374, %v373
    %v400 = vpack.c.bf16 %v376, %v375
    %v401 = vpack.c.bf16 %v378, %v377
    %v402 = vpack.c.bf16 %v380, %v379
    %v403 = vpack.c.bf16 %v382, %v381
    %v404 = vpack.c.bf16 %v384, %v383
    %v405 = vpack.c.bf16 %v386, %v385
    %v406 = vpack.c.bf16 %v388, %v387
    %v407 = vld [vmem:[%s3] sm:$0xff]
    %v408 = vld [vmem:[%s3 + $0x8] sm:$0xff]
    %410 = vset.pattern.permute.xlu0 0
    %411 = vperm.xlu0 %410, %v407
    %v412 = vpop.permute.xlu0 %411
    %415 = vset.pattern.permute.xlu0 0
    %416 = vperm.xlu0 %415, %v408
    %v417 = vpop.permute.xlu0 %416
    %v421 = vunpack.c.l.b16 %v389
    %v422 = vunpack.c.h.b16 %v389
    %v423 = vunpack.c.l.b16 %v390
    %v424 = vunpack.c.h.b16 %v390
    %v425 = vpack.c.b16 %v423, %v421
    %v426 = vpack.c.b16 %v424, %v422
    %429 = vmatprep.subr.bf16.mxu0 0
    %430 = vmatpush1.bf16.msra.mxu0 %v391
    %431 = vmatprep.subr.bf16.mxu0 0
    %432 = vmatpush1.bf16.msra.mxu0 %v392
    %433 = vmatprep.subr.bf16.mxu0 0
    %434 = vmatpush1.bf16.msra.mxu0 %v393
    %435 = vmatprep.subr.bf16.mxu0 0
    %436 = vmatpush1.bf16.msra.mxu0 %v394
    %437 = vmatprep.subr.bf16.mxu0 0
    %438 = vmatpush1.bf16.msra.mxu0 %v395
    %439 = vmatprep.subr.bf16.mxu0 0
    %440 = vmatpush1.bf16.msra.mxu0 %v396
    %441 = vmatprep.subr.bf16.mxu0 0
    %442 = vmatpush1.bf16.msra.mxu0 %v397
    %443 = vmatprep.subr.bf16.mxu0 0
    %444 = vmatpush1.bf16.msra.mxu0 %v398
    %445 = vmatprep.subr.bf16.mxu0 0
    %446 = vmatpush1.bf16.msra.mxu0 %v399
    %447 = vmatprep.subr.bf16.mxu0 0
    %448 = vmatpush1.bf16.msra.mxu0 %v400
    %449 = vmatprep.subr.bf16.mxu0 0
    %450 = vmatpush1.bf16.msra.mxu0 %v401
    %451 = vmatprep.subr.bf16.mxu0 0
    %452 = vmatpush1.bf16.msra.mxu0 %v402
    %453 = vmatprep.subr.bf16.mxu0 0
    %454 = vmatpush1.bf16.msra.mxu0 %v403
    %455 = vmatprep.subr.bf16.mxu0 0
    %456 = vmatpush1.bf16.msra.mxu0 %v404
    %457 = vmatprep.subr.bf16.mxu0 0
    %458 = vmatpush1.bf16.msra.mxu0 %v405
    %459 = vmatprep.subr.bf16.mxu0 0
    %460 = vmatpush1.bf16.msra.mxu0 %v406
    %461 = vmatprep.mubr.bf16.mxu0 %v426
    %462 = vmatmul.mubr.bf16.gmra.mrb[0].mxu0 %v425
    %v463 = vpop.f32.mrb[0].mxu0
    %v464 = vadd.f32 %v412, %v463
    %v465 = vpop.f32.mrb[0].mxu0
    %v466 = vpop.f32.mrb[0].mxu0
    %v467 = vadd.f32 %v417, %v466
    %v468 = vpop.f32.mrb[0].mxu0
    %469 = vdwg.mxu0
    %470 = vst [vmem:[#allocation2] sm:$0xff] %v464
    %471 = vst [vmem:[#allocation2 + $0x8] sm:$0xff] %v467
    // Predicated region
    $region18: #{tpu_custom_call.1} parent=1 // pred_check
      _
    $region19: #{tpu_custom_call.1} parent=1 // pred_check_branch
      %473 = sbr.rel (0) target = $region21
    $region20: #{tpu_custom_call.1} parent=1 // pred_region
      %s475 = ssub.s32 256, 256
      %476 = vsyncadd [#allocation3], %s475
      %s477 = sshll.u32 [#allocation2], 4
      %s478 = int_to_ptr.vmem [resolvable:$true] %s477
      %483 = dma.vmem_to_hbm [thread:$0]  %s478, 256, %s4, [#allocation3], 128, 128, 8
    $region21: #{tpu_custom_call.1} parent=1 // pred_fallthru
      _
    // Predicated region
    $region22: #{tpu_custom_call.1} parent=1 // pred_check
      _
    $region23: #{tpu_custom_call.1} parent=1 // pred_check_branch
      %485 = sbr.rel (0) target = $region25
    $region24: #{tpu_custom_call.1} parent=1 // pred_region
      %486 = dma.done [#allocation3], 256
    $region25: #{tpu_custom_call.1} parent=1 // pred_fallthru
      _
    %487 = vsyncpa [#allocation3], 1

</llo_original>
